<compile_context>
chip_gen: v5e
topology: v5e:2x2
jax: 0.10.0
libtpu: 0.0.40
codegen_flags: <defaults>
</compile_context>

<pallas_src>
import functools

import jax
import jax.numpy as jnp
from jax.experimental import pallas as pl
from jax.experimental.pallas import tpu as pltpu

LANE = 128                      # vreg lane width
MAX_TILE_B = 2048               # rows per grid step (multiple of 16); kernel is step-overhead bound
VMEM_LIMIT_BYTES = 48 * 1024 * 1024   # explicit scoped-VMEM limit, below v7x's 64 MiB physical


def _round_up(n, m):
    return (n + m - 1) // m * m


def _decoder_kernel(x_ref,
                    w1_ref, b1_ref,
                    w2_ref, b2_ref,
                    w3_ref, b3_ref,
                    w4_ref, b4_ref,
                    o_ref):
    """Fused fc1->relu->fc2->relu->fc3->relu->fc4->sigmoid on one batch tile.

    x arrives f32 straight from HBM (no wrapper pad/cast); weights are bf16,
    biases f32, accumulation + epilogue in f32, output stored as bf16.
    """
    x = x_ref[...].astype(jnp.bfloat16)

    # fc1 + ReLU (dropout == identity in eval mode)
    h = jnp.dot(x, w1_ref[...], preferred_element_type=jnp.float32) + b1_ref[...]
    h = jnp.maximum(h, 0.0).astype(jnp.bfloat16)

    # fc2 + ReLU
    h = jnp.dot(h, w2_ref[...], preferred_element_type=jnp.float32) + b2_ref[...]
    h = jnp.maximum(h, 0.0).astype(jnp.bfloat16)

    # fc3 + ReLU
    h = jnp.dot(h, w3_ref[...], preferred_element_type=jnp.float32) + b3_ref[...]
    h = jnp.maximum(h, 0.0).astype(jnp.bfloat16)

    # fc4 + sigmoid (exp on EUP, approx reciprocal on EUP -> VALU stays free)
    h = jnp.dot(h, w4_ref[...], preferred_element_type=jnp.float32) + b4_ref[...]
    o_ref[...] = pl.reciprocal(1.0 + jnp.exp(-h), approx=True).astype(o_ref.dtype)


def pack_params(params):
    """One-time weight packing: pad output/contraction dims to 128 lanes + bf16 cast.

    Done OUTSIDE the per-call path so each decoder call only streams x + output.
    w1's K dim stays at the logical input_size (x is not lane-padded); w2..w4 K
    dims match the previous layer's padded width (padded lanes carry zeros, so
    they contribute nothing).
    """
    h1 = params["w1"].shape[1]
    h2 = params["w2"].shape[1]
    out = params["w4"].shape[1]
    h1_p, h2_p, out_p = (_round_up(d, LANE) for d in (h1, h2, out))

    def pad_b(b, n_p):
        return jnp.pad(b, ((0, 0), (0, n_p - b.shape[1]))).astype(jnp.float32)

    w1p = jnp.pad(params["w1"], ((0, 0), (0, h1_p - h1))).astype(jnp.bfloat16)
    w2p = jnp.pad(params["w2"], ((0, h1_p - h1), (0, h2_p - h2))).astype(jnp.bfloat16)
    w3p = jnp.pad(params["w3"], ((0, h2_p - h2), (0, h2_p - h2))).astype(jnp.bfloat16)
    w4p = jnp.pad(params["w4"], ((0, h2_p - h2), (0, out_p - out))).astype(jnp.bfloat16)

    return dict(
        w1=w1p, b1=pad_b(params["b1"], h1_p),
        w2=w2p, b2=pad_b(params["b2"], h2_p),
        w3=w3p, b3=pad_b(params["b3"], h2_p),
        w4=w4p, b4=pad_b(params["b4"], out_p),
    )


@functools.partial(jax.jit, static_argnames=("out_size",))
def numerical_decoder(x, packed, *, out_size):
    """x: (B, input_size) f32. packed: output of pack_params. Returns (B, out_size) bf16."""
    B, in_size = x.shape
    h1_p = packed["w1"].shape[1]
    h2_p = packed["w2"].shape[1]
    out_p = packed["w4"].shape[1]

    # Batch tile: large (kernel is per-step-overhead / DMA bound), multiple of 16
    # (bf16 sublane packing), capped at ~B/2 so >=2 grid steps feed both v7x TCs,
    # and never more than one sublane group past B (no batch padding; the ragged
    # last block is masked by Pallas).
    tile_b = min(MAX_TILE_B,
                 _round_up(pl.cdiv(B, 2), 16),
                 _round_up(B, 8))
    grid = (pl.cdiv(B, tile_b),)

    def pinned(shape):
        # Full-array block + constant index_map -> DMA'd once, stays VMEM-resident.
        # TODO(synk): at realistic hidden sizes on v7x (64 MiB VMEM), single-buffer
        # these (pipeline_mode=pl.Buffered(1)) to halve the resident weight footprint.
        return pl.BlockSpec(shape, lambda i: (0, 0))

    flops = 2 * B * (in_size * h1_p + h1_p * h2_p + h2_p * h2_p + h2_p * out_p)
    bytes_accessed = (
        x.size * x.dtype.itemsize
        + sum(int(v.size) * v.dtype.itemsize for v in packed.values())
        + B * out_p * 2)  # bf16 output stream

    out_padded = pl.pallas_call(
        _decoder_kernel,
        out_shape=jax.ShapeDtypeStruct((B, out_p), jnp.bfloat16),
        grid=grid,
        in_specs=[
            # x: batch-tiled, no lane padding (block last dim == full array dim).
            pl.BlockSpec((tile_b, in_size), lambda i: (i, 0)),
            pinned((in_size, h1_p)), pinned((1, h1_p)),   # fc1
            pinned((h1_p, h2_p)),    pinned((1, h2_p)),   # fc2
            pinned((h2_p, h2_p)),    pinned((1, h2_p)),   # fc3
            pinned((h2_p, out_p)),   pinned((1, out_p)),  # fc4
        ],
        out_specs=pl.BlockSpec((tile_b, out_p), lambda i: (i, 0)),
        compiler_params=pltpu.CompilerParams(
            dimension_semantics=("parallel",),            # v7x: 2 TCs share batch tiles
            vmem_limit_bytes=VMEM_LIMIT_BYTES),
        cost_estimate=pl.CostEstimate(
            flops=flops,
            transcendentals=B * out_p,
            bytes_accessed=bytes_accessed),
    )(x, packed["w1"], packed["b1"], packed["w2"], packed["b2"],
      packed["w3"], packed["b3"], packed["w4"], packed["b4"])

    # Lane slice only (batch rows are already exact).
    # TODO(synk): consumers that accept the padded (B, 128) bf16 buffer can skip
    #             this slice and save one extra HBM pass over the output.
    return out_padded[:, :out_size]


def init_params(key, input_size, hidden_size1, hidden_size2, output_size):
    """Deterministic init matching nn.Linear: U(-1/sqrt(fan_in), 1/sqrt(fan_in)).

    Weights are stored transposed vs. PyTorch, i.e. (fan_in, fan_out), so the
    kernel computes x @ W directly. Biases are (1, fan_out).
    """
    def linear(k, fan_in, fan_out):
        kw, kb = jax.random.split(k)
        bound = 1.0 / jnp.sqrt(fan_in)
        w = jax.random.uniform(kw, (fan_in, fan_out), jnp.float32, -bound, bound)
        b = jax.random.uniform(kb, (1, fan_out), jnp.float32, -bound, bound)
        return w, b

    k1, k2, k3, k4 = jax.random.split(key, 4)
    w1, b1 = linear(k1, input_size, hidden_size1)
    w2, b2 = linear(k2, hidden_size1, hidden_size2)
    w3, b3 = linear(k3, hidden_size2, hidden_size2)
    w4, b4 = linear(k4, hidden_size2, output_size)
    return dict(w1=w1, b1=b1, w2=w2, b2=b2, w3=w3, b3=b3, w4=w4, b4=b4)


def _reference(x, p):
    """Pure-JAX f32 reference of the same forward pass (eval mode)."""
    h = jnp.maximum(x @ p["w1"] + p["b1"], 0.0)
    h = jnp.maximum(h @ p["w2"] + p["b2"], 0.0)
    h = jnp.maximum(h @ p["w3"] + p["b3"], 0.0)
    return jax.nn.sigmoid(h @ p["w4"] + p["b4"])


if __name__ == "__main__":
    # Small shapes consistent with the module: batch=8, input=32, h1=64, h2=32, out=16
    B, INPUT, H1, H2, OUT = 8, 32, 64, 32, 16

    key = jax.random.PRNGKey(0)
    kx, kp = jax.random.split(key)
    x = jax.random.normal(kx, (B, INPUT), jnp.float32)

    params = init_params(kp, INPUT, H1, H2, OUT)
    packed = pack_params(params)          # one-time packing, outside the per-call path

    out = numerical_decoder(x, packed, out_size=OUT)
    out = jax.block_until_ready(out)

    ref = _reference(x, params)
    assert out.shape == (B, OUT), out.shape
    assert out.dtype == jnp.bfloat16, out.dtype
    # bf16 MXU inputs / bf16 output + approx reciprocal -> loose tolerance on the
    # bounded (0,1) sigmoid output.
    assert jnp.allclose(out.astype(jnp.float32), ref, atol=3e-2, rtol=3e-2), \
        "mismatch vs reference"

    print("KERNEL_OK")
</pallas_src>

<mosaic_0001>
module attributes {stable_mosaic.version = 11 : i64} {
  func.func @_decoder_kernel(%arg0: i32, %arg1: memref<8x32xf32, #tpu.memory_space<vmem>>, %arg2: memref<32x128xbf16, #tpu.memory_space<vmem>>, %arg3: memref<1x128xf32, #tpu.memory_space<vmem>>, %arg4: memref<128x128xbf16, #tpu.memory_space<vmem>>, %arg5: memref<1x128xf32, #tpu.memory_space<vmem>>, %arg6: memref<128x128xbf16, #tpu.memory_space<vmem>>, %arg7: memref<1x128xf32, #tpu.memory_space<vmem>>, %arg8: memref<128x128xbf16, #tpu.memory_space<vmem>>, %arg9: memref<1x128xf32, #tpu.memory_space<vmem>>, %arg10: memref<8x128xbf16, #tpu.memory_space<vmem>>) attributes {dimension_semantics = [#tpu.dimension_semantics<parallel>], iteration_bounds = array<i64: 1>, scalar_prefetch = 0 : i64, scratch_operands = 0 : i64, tpu.core_type = #tpu.core_type<tc>, window_params = [{transform_indices = @transform_0, window_bounds = array<i64: 8, 32>}, {pipeline_mode = #tpu.pipeline_mode<synchronous>, transform_indices = @transform_1, window_bounds = array<i64: 32, 128>}, {pipeline_mode = #tpu.pipeline_mode<synchronous>, transform_indices = @transform_2, window_bounds = array<i64: 1, 128>}, {pipeline_mode = #tpu.pipeline_mode<synchronous>, transform_indices = @transform_3, window_bounds = array<i64: 128, 128>}, {pipeline_mode = #tpu.pipeline_mode<synchronous>, transform_indices = @transform_4, window_bounds = array<i64: 1, 128>}, {pipeline_mode = #tpu.pipeline_mode<synchronous>, transform_indices = @transform_5, window_bounds = array<i64: 128, 128>}, {pipeline_mode = #tpu.pipeline_mode<synchronous>, transform_indices = @transform_6, window_bounds = array<i64: 1, 128>}, {pipeline_mode = #tpu.pipeline_mode<synchronous>, transform_indices = @transform_7, window_bounds = array<i64: 128, 128>}, {pipeline_mode = #tpu.pipeline_mode<synchronous>, transform_indices = @transform_8, window_bounds = array<i64: 1, 128>}, {transform_indices = @transform_9, window_bounds = array<i64: 8, 128>}]} {
    %c0 = arith.constant 0 : index
    %c0_0 = arith.constant 0 : index
    %0 = vector.load %arg1[%c0, %c0_0] : memref<8x32xf32, #tpu.memory_space<vmem>>, vector<8x32xf32>
    %1 = arith.truncf %0 : vector<8x32xf32> to vector<8x32xbf16>
    %c0_1 = arith.constant 0 : index
    %c0_2 = arith.constant 0 : index
    %2 = vector.load %arg2[%c0_1, %c0_2] : memref<32x128xbf16, #tpu.memory_space<vmem>>, vector<32x128xbf16>
    %cst = arith.constant dense<0.000000e+00> : vector<8x128xf32>
    %3 = tpu.matmul %1, %2, %cst {dimension_numbers = #tpu.dot_dimension_numbers<[1], [0], [0], [1], [0, 0, 1, 1], [], []>} : vector<8x32xbf16>, vector<32x128xbf16>, vector<8x128xf32> -> vector<8x128xf32>
    %c0_3 = arith.constant 0 : index
    %c0_4 = arith.constant 0 : index
    %4 = vector.load %arg3[%c0_3, %c0_4] : memref<1x128xf32, #tpu.memory_space<vmem>>, vector<1x128xf32>
    %5 = vector.broadcast %4 : vector<1x128xf32> to vector<8x128xf32>
    %6 = arith.addf %3, %5 : vector<8x128xf32>
    %cst_5 = arith.constant 0.000000e+00 : f32
    %7 = vector.broadcast %cst_5 : f32 to vector<8x128xf32>
    %8 = arith.maximumf %6, %7 : vector<8x128xf32>
    %9 = arith.truncf %8 : vector<8x128xf32> to vector<8x128xbf16>
    %c0_6 = arith.constant 0 : index
    %c0_7 = arith.constant 0 : index
    %10 = vector.load %arg4[%c0_6, %c0_7] : memref<128x128xbf16, #tpu.memory_space<vmem>>, vector<128x128xbf16>
    %cst_8 = arith.constant dense<0.000000e+00> : vector<8x128xf32>
    %11 = tpu.matmul %9, %10, %cst_8 {dimension_numbers = #tpu.dot_dimension_numbers<[1], [0], [0], [1], [0, 0, 1, 1], [], []>} : vector<8x128xbf16>, vector<128x128xbf16>, vector<8x128xf32> -> vector<8x128xf32>
    %c0_9 = arith.constant 0 : index
    %c0_10 = arith.constant 0 : index
    %12 = vector.load %arg5[%c0_9, %c0_10] : memref<1x128xf32, #tpu.memory_space<vmem>>, vector<1x128xf32>
    %13 = vector.broadcast %12 : vector<1x128xf32> to vector<8x128xf32>
    %14 = arith.addf %11, %13 : vector<8x128xf32>
    %cst_11 = arith.constant 0.000000e+00 : f32
    %15 = vector.broadcast %cst_11 : f32 to vector<8x128xf32>
    %16 = arith.maximumf %14, %15 : vector<8x128xf32>
    %17 = arith.truncf %16 : vector<8x128xf32> to vector<8x128xbf16>
    %c0_12 = arith.constant 0 : index
    %c0_13 = arith.constant 0 : index
    %18 = vector.load %arg6[%c0_12, %c0_13] : memref<128x128xbf16, #tpu.memory_space<vmem>>, vector<128x128xbf16>
    %cst_14 = arith.constant dense<0.000000e+00> : vector<8x128xf32>
    %19 = tpu.matmul %17, %18, %cst_14 {dimension_numbers = #tpu.dot_dimension_numbers<[1], [0], [0], [1], [0, 0, 1, 1], [], []>} : vector<8x128xbf16>, vector<128x128xbf16>, vector<8x128xf32> -> vector<8x128xf32>
    %c0_15 = arith.constant 0 : index
    %c0_16 = arith.constant 0 : index
    %20 = vector.load %arg7[%c0_15, %c0_16] : memref<1x128xf32, #tpu.memory_space<vmem>>, vector<1x128xf32>
    %21 = vector.broadcast %20 : vector<1x128xf32> to vector<8x128xf32>
    %22 = arith.addf %19, %21 : vector<8x128xf32>
    %cst_17 = arith.constant 0.000000e+00 : f32
    %23 = vector.broadcast %cst_17 : f32 to vector<8x128xf32>
    %24 = arith.maximumf %22, %23 : vector<8x128xf32>
    %25 = arith.truncf %24 : vector<8x128xf32> to vector<8x128xbf16>
    %c0_18 = arith.constant 0 : index
    %c0_19 = arith.constant 0 : index
    %26 = vector.load %arg8[%c0_18, %c0_19] : memref<128x128xbf16, #tpu.memory_space<vmem>>, vector<128x128xbf16>
    %cst_20 = arith.constant dense<0.000000e+00> : vector<8x128xf32>
    %27 = tpu.matmul %25, %26, %cst_20 {dimension_numbers = #tpu.dot_dimension_numbers<[1], [0], [0], [1], [0, 0, 1, 1], [], []>} : vector<8x128xbf16>, vector<128x128xbf16>, vector<8x128xf32> -> vector<8x128xf32>
    %c0_21 = arith.constant 0 : index
    %c0_22 = arith.constant 0 : index
    %28 = vector.load %arg9[%c0_21, %c0_22] : memref<1x128xf32, #tpu.memory_space<vmem>>, vector<1x128xf32>
    %29 = vector.broadcast %28 : vector<1x128xf32> to vector<8x128xf32>
    %30 = arith.addf %27, %29 : vector<8x128xf32>
    %cst_23 = arith.constant 0.000000e+00 : f32
    %31 = vector.broadcast %cst_23 : f32 to vector<8x128xf32>
    %32 = arith.subf %31, %30 : vector<8x128xf32>
    %33 = math.exp %32 : vector<8x128xf32>
    %cst_24 = arith.constant 1.000000e+00 : f32
    %34 = vector.broadcast %cst_24 : f32 to vector<8x128xf32>
    %35 = arith.addf %34, %33 : vector<8x128xf32>
    %36 = tpu.reciprocal %35 {approx = true} : vector<8x128xf32> -> vector<8x128xf32>
    %37 = arith.truncf %36 : vector<8x128xf32> to vector<8x128xbf16>
    %c0_25 = arith.constant 0 : index
    %c0_26 = arith.constant 0 : index
    %38 = vector.load %arg10[%c0_25, %c0_26] : memref<8x128xbf16, #tpu.memory_space<vmem>>, vector<8x128xbf16>
    tpu.vector_store %arg10[%c0_25, %c0_26], %37 {strides = array<i32>} : memref<8x128xbf16, #tpu.memory_space<vmem>>, vector<8x128xbf16>,
    return
  }
  func.func @transform_0(%arg0: i32) -> (i32, i32) {
    %c0_i32 = arith.constant 0 : i32
    %c0_i32_0 = arith.constant 0 : i32
    return %arg0, %c0_i32 : i32, i32
  }
  func.func @transform_1(%arg0: i32) -> (i32, i32) {
    %c0_i32 = arith.constant 0 : i32
    %c0_i32_0 = arith.constant 0 : i32
    %c0_i32_1 = arith.constant 0 : i32
    return %c0_i32, %c0_i32_0 : i32, i32
  }
  func.func @transform_2(%arg0: i32) -> (i32, i32) {
    %c0_i32 = arith.constant 0 : i32
    %c0_i32_0 = arith.constant 0 : i32
    %c0_i32_1 = arith.constant 0 : i32
    return %c0_i32, %c0_i32_0 : i32, i32
  }
  func.func @transform_3(%arg0: i32) -> (i32, i32) {
    %c0_i32 = arith.constant 0 : i32
    %c0_i32_0 = arith.constant 0 : i32
    %c0_i32_1 = arith.constant 0 : i32
    return %c0_i32, %c0_i32_0 : i32, i32
  }
  func.func @transform_4(%arg0: i32) -> (i32, i32) {
    %c0_i32 = arith.constant 0 : i32
    %c0_i32_0 = arith.constant 0 : i32
    %c0_i32_1 = arith.constant 0 : i32
    return %c0_i32, %c0_i32_0 : i32, i32
  }
  func.func @transform_5(%arg0: i32) -> (i32, i32) {
    %c0_i32 = arith.constant 0 : i32
    %c0_i32_0 = arith.constant 0 : i32
    %c0_i32_1 = arith.constant 0 : i32
    return %c0_i32, %c0_i32_0 : i32, i32
  }
  func.func @transform_6(%arg0: i32) -> (i32, i32) {
    %c0_i32 = arith.constant 0 : i32
    %c0_i32_0 = arith.constant 0 : i32
    %c0_i32_1 = arith.constant 0 : i32
    return %c0_i32, %c0_i32_0 : i32, i32
  }
  func.func @transform_7(%arg0: i32) -> (i32, i32) {
    %c0_i32 = arith.constant 0 : i32
    %c0_i32_0 = arith.constant 0 : i32
    %c0_i32_1 = arith.constant 0 : i32
    return %c0_i32, %c0_i32_0 : i32, i32
  }
  func.func @transform_8(%arg0: i32) -> (i32, i32) {
    %c0_i32 = arith.constant 0 : i32
    %c0_i32_0 = arith.constant 0 : i32
    %c0_i32_1 = arith.constant 0 : i32
    return %c0_i32, %c0_i32_0 : i32, i32
  }
  func.func @transform_9(%arg0: i32) -> (i32, i32) {
    %c0_i32 = arith.constant 0 : i32
    %c0_i32_0 = arith.constant 0 : i32
    return %arg0, %c0_i32 : i32, i32
  }
}

</mosaic_0001>

<llo_original>
// kernel: numerical_decoder.1
$region0: #{numerical_decoder.1}
  #allocation0 [shape = 'u32[]', space=smem, size = 0x4, offset = 0x4, fixed_abs, tag = 'smem constant byte address 0x4 - core index']
  #allocation1 [shape = 'u32[72,128]{1,0:T(1,128)}', space=vmem, size = 0x9000, scoped, tag = 'internal scratch']
  %s0 = inlined_call_operand.hbm [shape: f32[8,32], index: 0, kind: input, shape index: {}]
  %s1 = inlined_call_operand.hbm [shape: bf16[32,128], index: 1, kind: input, shape index: {}]
  %s2 = inlined_call_operand.hbm [shape: f32[1,128], index: 2, kind: input, shape index: {}]
  %s3 = inlined_call_operand.hbm [shape: bf16[128,128], index: 3, kind: input, shape index: {}]
  %s4 = inlined_call_operand.vmem [shape: f32[1,128], index: 4, kind: input, shape index: {}]
  %s5 = inlined_call_operand.hbm [shape: bf16[128,128], index: 5, kind: input, shape index: {}]
  %s6 = inlined_call_operand.vmem [shape: f32[1,128], index: 6, kind: input, shape index: {}]
  %s7 = inlined_call_operand.hbm [shape: bf16[128,128], index: 7, kind: input, shape index: {}]
  %s8 = inlined_call_operand.vmem [shape: f32[1,128], index: 8, kind: input, shape index: {}]
  %s9 = inlined_call_operand.hbm [shape: bf16[8,128], index: 9, kind: output, shape index: {}]
  %s10 = sld [smem:[#allocation0]]
  $region70: #{numerical_decoder.1} parent=0
    _
  %s12 = ssub.s32 1, %s10
  %s13 = scalar_select 0, %s12, %s10
  $region1: #{numerical_decoder.1} parent=0
    #allocation2 [shape = 'u8[4096]{0}', space=vmem, size = 0x1000, scoped, tag = 'input window, operand 0, single buffered']
    #allocation3 [shape = 's32[1]{0}', space=sflag, size = 0x4, scoped, tag = 'scoped memory for numerical_decoder.1']
    #allocation4 [shape = 's32[1]{0}', space=sflag, size = 0x4, scoped, tag = 'scoped memory for numerical_decoder.1']
    #allocation5 [shape = 'u8[8192]{0}', space=vmem, size = 0x2000, scoped, tag = 'input window, operand 1, single buffered']
    #allocation6 [shape = 's32[1]{0}', space=sflag, size = 0x4, scoped, tag = 'scoped memory for numerical_decoder.1']
    #allocation7 [shape = 'u8[512]{0}', space=vmem, size = 0x400, scoped, tag = 'input window, operand 2, single buffered']
    #allocation8 [shape = 'u8[32768]{0}', space=vmem, size = 0x8000, scoped, tag = 'input window, operand 3, single buffered']
    #allocation9 [shape = 's32[1]{0}', space=sflag, size = 0x4, scoped, tag = 'scoped memory for numerical_decoder.1']
    #allocation10 [shape = 'u8[32768]{0}', space=vmem, size = 0x8000, scoped, tag = 'input window, operand 5, single buffered']
    #allocation11 [shape = 'u8[32768]{0}', space=vmem, size = 0x8000, scoped, tag = 'input window, operand 7, single buffered']
    #allocation12 [shape = 's32[1]{0}', space=sflag, size = 0x4, scoped, tag = 'scoped memory for numerical_decoder.1']
    #allocation13 [shape = 'u8[2048]{0}', space=vmem, size = 0x800, scoped, tag = 'output window, operand 0, single buffered']
    %14 = vsyncpa [#allocation3], 0
    %15 = vsyncpa [#allocation6], 0
    %16 = vsyncpa [#allocation9], 0
    %17 = vsyncpa [#allocation12], 0
    %18 = vsyncpa [#allocation4], 0
    // Predicated region
    $region2: #{numerical_decoder.1} parent=1 // pred_check
      _
    $region3: #{numerical_decoder.1} parent=1 // pred_check_branch
      %20 = sbr.rel (0) target = $region5
    $region4: #{numerical_decoder.1} parent=1 // pred_region
      %22 = vsyncadd [#allocation3], 0
      %s24 = sshll.u32 %s0, 4
      %s25 = int_to_ptr.hbm [resolvable:$true] %s24
      %s26 = sshll.u32 [#allocation2], 4
      %s27 = int_to_ptr.vmem [resolvable:$true] %s26
      %29 = dma.hbm_to_vmem [thread:$0]  %s25, 128, %s27, [#allocation3]
    $region5: #{numerical_decoder.1} parent=1 // pred_fallthru
      _
    // Predicated region
    $region6: #{numerical_decoder.1} parent=1 // pred_check
      _
    $region7: #{numerical_decoder.1} parent=1 // pred_check_branch
      %31 = sbr.rel (0) target = $region9
    $region8: #{numerical_decoder.1} parent=1 // pred_region
      %33 = vsyncadd [#allocation6], 0
      %s34 = sshll.u32 %s1, 4
      %s35 = int_to_ptr.hbm [resolvable:$true] %s34
      %s36 = sshll.u32 [#allocation5], 4
      %s37 = int_to_ptr.vmem [resolvable:$true] %s36
      %42 = dma.hbm_to_vmem [thread:$0]  %s35, 256, %s37, [#allocation6], 64, 64, 4
    $region9: #{numerical_decoder.1} parent=1 // pred_fallthru
      _
    // Predicated region
    $region10: #{numerical_decoder.1} parent=1 // pred_check
      _
    $region11: #{numerical_decoder.1} parent=1 // pred_check_branch
      %44 = sbr.rel (0) target = $region13
    $region12: #{numerical_decoder.1} parent=1 // pred_region
      %46 = vsyncadd [#allocation6], 0
      %s48 = sshll.u32 %s2, 4
      %s49 = int_to_ptr.hbm [resolvable:$true] %s48
      %s50 = sshll.u32 [#allocation7], 4
      %s51 = int_to_ptr.vmem [resolvable:$true] %s50
      %53 = dma.hbm_to_vmem [thread:$0]  %s49, 16, %s51, [#allocation6]
    $region13: #{numerical_decoder.1} parent=1 // pred_fallthru
      _
    // Predicated region
    $region14: #{numerical_decoder.1} parent=1 // pred_check
      _
    $region15: #{numerical_decoder.1} parent=1 // pred_check_branch
      %55 = sbr.rel (0) target = $region17
    $region16: #{numerical_decoder.1} parent=1 // pred_region
      %57 = vsyncadd [#allocation9], 0
      %s58 = sshll.u32 %s3, 4
      %s59 = int_to_ptr.hbm [resolvable:$true] %s58
      %s60 = sshll.u32 [#allocation8], 4
      %s61 = int_to_ptr.vmem [resolvable:$true] %s60
      %66 = dma.hbm_to_vmem [thread:$0]  %s59, 1024, %s61, [#allocation9], 64, 64, 4
    $region17: #{numerical_decoder.1} parent=1 // pred_fallthru
      _
    // Predicated region
    $region18: #{numerical_decoder.1} parent=1 // pred_check
      _
    $region19: #{numerical_decoder.1} parent=1 // pred_check_branch
      %68 = sbr.rel (0) target = $region21
    $region20: #{numerical_decoder.1} parent=1 // pred_region
      _
    $region21: #{numerical_decoder.1} parent=1 // pred_fallthru
      _
    // Predicated region
    $region22: #{numerical_decoder.1} parent=1 // pred_check
      _
    $region23: #{numerical_decoder.1} parent=1 // pred_check_branch
      %70 = sbr.rel (0) target = $region25
    $region24: #{numerical_decoder.1} parent=1 // pred_region
      %72 = vsyncadd [#allocation9], 0
      %s73 = sshll.u32 %s5, 4
      %s74 = int_to_ptr.hbm [resolvable:$true] %s73
      %s75 = sshll.u32 [#allocation10], 4
      %s76 = int_to_ptr.vmem [resolvable:$true] %s75
      %81 = dma.hbm_to_vmem [thread:$0]  %s74, 1024, %s76, [#allocation9], 64, 64, 4
    $region25: #{numerical_decoder.1} parent=1 // pred_fallthru
      _
    // Predicated region
    $region26: #{numerical_decoder.1} parent=1 // pred_check
      _
    $region27: #{numerical_decoder.1} parent=1 // pred_check_branch
      %83 = sbr.rel (0) target = $region29
    $region28: #{numerical_decoder.1} parent=1 // pred_region
      _
    $region29: #{numerical_decoder.1} parent=1 // pred_fallthru
      _
    // Predicated region
    $region30: #{numerical_decoder.1} parent=1 // pred_check
      _
    $region31: #{numerical_decoder.1} parent=1 // pred_check_branch
      %85 = sbr.rel (0) target = $region33
    $region32: #{numerical_decoder.1} parent=1 // pred_region
      %87 = vsyncadd [#allocation12], 0
      %s88 = sshll.u32 %s7, 4
      %s89 = int_to_ptr.hbm [resolvable:$true] %s88
      %s90 = sshll.u32 [#allocation11], 4
      %s91 = int_to_ptr.vmem [resolvable:$true] %s90
      %96 = dma.hbm_to_vmem [thread:$0]  %s89, 1024, %s91, [#allocation12], 64, 64, 4
    $region33: #{numerical_decoder.1} parent=1 // pred_fallthru
      _
    // Predicated region
    $region34: #{numerical_decoder.1} parent=1 // pred_check
      _
    $region35: #{numerical_decoder.1} parent=1 // pred_check_branch
      %98 = sbr.rel (0) target = $region37
    $region36: #{numerical_decoder.1} parent=1 // pred_region
      _
    $region37: #{numerical_decoder.1} parent=1 // pred_fallthru
      _
    // Predicated region
    $region38: #{numerical_decoder.1} parent=1 // pred_check
      _
    $region39: #{numerical_decoder.1} parent=1 // pred_check_branch
      %100 = sbr.rel (0) target = $region41
    $region40: #{numerical_decoder.1} parent=1 // pred_region
      %102 = dma.done [#allocation3], 128
    $region41: #{numerical_decoder.1} parent=1 // pred_fallthru
      _
    // Predicated region
    $region42: #{numerical_decoder.1} parent=1 // pred_check
      _
    $region43: #{numerical_decoder.1} parent=1 // pred_check_branch
      %104 = sbr.rel (0) target = $region45
    $region44: #{numerical_decoder.1} parent=1 // pred_region
      %106 = dma.done [#allocation6], 256
    $region45: #{numerical_decoder.1} parent=1 // pred_fallthru
      _
    // Predicated region
    $region46: #{numerical_decoder.1} parent=1 // pred_check
      _
    $region47: #{numerical_decoder.1} parent=1 // pred_check_branch
      %108 = sbr.rel (0) target = $region49
    $region48: #{numerical_decoder.1} parent=1 // pred_region
      %110 = dma.done [#allocation6], 16
    $region49: #{numerical_decoder.1} parent=1 // pred_fallthru
      _
    // Predicated region
    $region50: #{numerical_decoder.1} parent=1 // pred_check
      _
    $region51: #{numerical_decoder.1} parent=1 // pred_check_branch
      %112 = sbr.rel (0) target = $region53
    $region52: #{numerical_decoder.1} parent=1 // pred_region
      %114 = dma.done [#allocation9], 1024
    $region53: #{numerical_decoder.1} parent=1 // pred_fallthru
      _
    // Predicated region
    $region54: #{numerical_decoder.1} parent=1 // pred_check
      _
    $region55: #{numerical_decoder.1} parent=1 // pred_check_branch
      %116 = sbr.rel (0) target = $region57
    $region56: #{numerical_decoder.1} parent=1 // pred_region
      %118 = dma.done [#allocation9], 1024
    $region57: #{numerical_decoder.1} parent=1 // pred_fallthru
      _
    // Predicated region
    $region58: #{numerical_decoder.1} parent=1 // pred_check
      _
    $region59: #{numerical_decoder.1} parent=1 // pred_check_branch
      %120 = sbr.rel (0) target = $region61
    $region60: #{numerical_decoder.1} parent=1 // pred_region
      %122 = dma.done [#allocation12], 1024
    $region61: #{numerical_decoder.1} parent=1 // pred_fallthru
      _
    %v124 = vld [vmem:[#allocation2] sm:$0xff]
    %v125 = vpack.c.bf16 %v124, %v124
    %v126 = vld [vmem:[#allocation5] sm:$0xf]
    %v127 = vld [vmem:[#allocation5 + $0x4] sm:$0xf]
    %v128 = vld [vmem:[#allocation5 + $0x8] sm:$0xf]
    %v129 = vld [vmem:[#allocation5 + $0xc] sm:$0xf]
    %v130 = vld [vmem:[#allocation7] sm:$0x1]
    %v132 = vperm.slane %v130, 0
    %v138 = vunpack.c.l.b16 %v126
    %v139 = vunpack.c.l.b16 %v127
    %v140 = vunpack.c.l.b16 %v128
    %v141 = vunpack.c.l.b16 %v129
    %v142 = vpack.c.b16 %v139, %v138
    %v143 = vpack.c.b16 %v141, %v140
    %vm146 = vcmask 261120
    %v148 = vsel %vm146, %v125, 0
    %150 = vmatpush.bf16.msra.mxu0 0
    %151 = vmatpush.bf16.msra.mxu0 0
    %152 = vmatpush.bf16.msra.mxu0 0
    %153 = vmatpush.bf16.msra.mxu0 0
    %154 = vmatpush.bf16.msra.mxu0 0
    %155 = vmatpush.bf16.msra.mxu0 0
    %156 = vmatpush.bf16.msra.mxu0 %v143
    %157 = vmatpush.bf16.msra.mxu0 %v142
    %158 = vmatmul.bf16.gmra.mxu0 %v148
    %v159 = vpop.f32.mrf.mxu0
    %v160 = vadd.f32 %v132, %v159
    %v161 = vpop.f32.mrf.mxu0
    %162 = vdwg.mxu0
    %v163 = vmax.f32 %v160, 0.0
    %v164 = vpack.c.bf16 %v163, %v163
    %v165 = vld [vmem:[#allocation8] sm:$0xf]
    %v166 = vld [vmem:[#allocation8 + $0x4] sm:$0xf]
    %v167 = vld [vmem:[#allocation8 + $0x8] sm:$0xf]
    %v168 = vld [vmem:[#allocation8 + $0xc] sm:$0xf]
    %v169 = vld [vmem:[#allocation8 + $0x10] sm:$0xf]
    %v170 = vld [vmem:[#allocation8 + $0x14] sm:$0xf]
    %v171 = vld [vmem:[#allocation8 + $0x18] sm:$0xf]
    %v172 = vld [vmem:[#allocation8 + $0x1c] sm:$0xf]
    %v173 = vld [vmem:[#allocation8 + $0x20] sm:$0xf]
    %v174 = vld [vmem:[#allocation8 + $0x24] sm:$0xf]
    %v175 = vld [vmem:[#allocation8 + $0x28] sm:$0xf]
    %v176 = vld [vmem:[#allocation8 + $0x2c] sm:$0xf]
    %v177 = vld [vmem:[#allocation8 + $0x30] sm:$0xf]
    %v178 = vld [vmem:[#allocation8 + $0x34] sm:$0xf]
    %v179 = vld [vmem:[#allocation8 + $0x38] sm:$0xf]
    %v180 = vld [vmem:[#allocation8 + $0x3c] sm:$0xf]
    %v181 = vld [vmem:[%s4] sm:$0x1]
    %v183 = vperm.slane %v181, 0
    %v201 = vunpack.c.l.b16 %v165
    %v202 = vunpack.c.l.b16 %v166
    %v203 = vunpack.c.l.b16 %v167
    %v204 = vunpack.c.l.b16 %v168
    %v205 = vunpack.c.l.b16 %v169
    %v206 = vunpack.c.l.b16 %v170
    %v207 = vunpack.c.l.b16 %v171
    %v208 = vunpack.c.l.b16 %v172
    %v209 = vunpack.c.l.b16 %v173
    %v210 = vunpack.c.l.b16 %v174
    %v211 = vunpack.c.l.b16 %v175
    %v212 = vunpack.c.l.b16 %v176
    %v213 = vunpack.c.l.b16 %v177
    %v214 = vunpack.c.l.b16 %v178
    %v215 = vunpack.c.l.b16 %v179
    %v216 = vunpack.c.l.b16 %v180
    %v217 = vpack.c.b16 %v202, %v201
    %v218 = vpack.c.b16 %v204, %v203
    %v219 = vpack.c.b16 %v206, %v205
    %v220 = vpack.c.b16 %v208, %v207
    %v221 = vpack.c.b16 %v210, %v209
    %v222 = vpack.c.b16 %v212, %v211
    %v223 = vpack.c.b16 %v214, %v213
    %v224 = vpack.c.b16 %v216, %v215
    %233 = vmatpush.bf16.msra.mxu0 %v224
    %234 = vmatpush.bf16.msra.mxu0 %v223
    %235 = vmatpush.bf16.msra.mxu0 %v222
    %236 = vmatpush.bf16.msra.mxu0 %v221
    %237 = vmatpush.bf16.msra.mxu0 %v220
    %238 = vmatpush.bf16.msra.mxu0 %v219
    %239 = vmatpush.bf16.msra.mxu0 %v218
    %240 = vmatpush.bf16.msra.mxu0 %v217
    %241 = vmatmul.bf16.gmra.mxu0 %v164
    %v242 = vpop.f32.mrf.mxu0
    %v243 = vadd.f32 %v183, %v242
    %v244 = vpop.f32.mrf.mxu0
    %245 = vdwg.mxu0
    %v246 = vmax.f32 %v243, 0.0
    %v247 = vpack.c.bf16 %v246, %v246
    %v248 = vld [vmem:[#allocation10] sm:$0xf]
    %v249 = vld [vmem:[#allocation10 + $0x4] sm:$0xf]
    %v250 = vld [vmem:[#allocation10 + $0x8] sm:$0xf]
    %v251 = vld [vmem:[#allocation10 + $0xc] sm:$0xf]
    %v252 = vld [vmem:[#allocation10 + $0x10] sm:$0xf]
    %v253 = vld [vmem:[#allocation10 + $0x14] sm:$0xf]
    %v254 = vld [vmem:[#allocation10 + $0x18] sm:$0xf]
    %v255 = vld [vmem:[#allocation10 + $0x1c] sm:$0xf]
    %v256 = vld [vmem:[#allocation10 + $0x20] sm:$0xf]
    %v257 = vld [vmem:[#allocation10 + $0x24] sm:$0xf]
    %v258 = vld [vmem:[#allocation10 + $0x28] sm:$0xf]
    %v259 = vld [vmem:[#allocation10 + $0x2c] sm:$0xf]
    %v260 = vld [vmem:[#allocation10 + $0x30] sm:$0xf]
    %v261 = vld [vmem:[#allocation10 + $0x34] sm:$0xf]
    %v262 = vld [vmem:[#allocation10 + $0x38] sm:$0xf]
    %v263 = vld [vmem:[#allocation10 + $0x3c] sm:$0xf]
    %v264 = vld [vmem:[%s6] sm:$0x1]
    %v266 = vperm.slane %v264, 0
    %v284 = vunpack.c.l.b16 %v248
    %v285 = vunpack.c.l.b16 %v249
    %v286 = vunpack.c.l.b16 %v250
    %v287 = vunpack.c.l.b16 %v251
    %v288 = vunpack.c.l.b16 %v252
    %v289 = vunpack.c.l.b16 %v253
    %v290 = vunpack.c.l.b16 %v254
    %v291 = vunpack.c.l.b16 %v255
    %v292 = vunpack.c.l.b16 %v256
    %v293 = vunpack.c.l.b16 %v257
    %v294 = vunpack.c.l.b16 %v258
    %v295 = vunpack.c.l.b16 %v259
    %v296 = vunpack.c.l.b16 %v260
    %v297 = vunpack.c.l.b16 %v261
    %v298 = vunpack.c.l.b16 %v262
    %v299 = vunpack.c.l.b16 %v263
    %v300 = vpack.c.b16 %v285, %v284
    %v301 = vpack.c.b16 %v287, %v286
    %v302 = vpack.c.b16 %v289, %v288
    %v303 = vpack.c.b16 %v291, %v290
    %v304 = vpack.c.b16 %v293, %v292
    %v305 = vpack.c.b16 %v295, %v294
    %v306 = vpack.c.b16 %v297, %v296
    %v307 = vpack.c.b16 %v299, %v298
    %316 = vmatpush.bf16.msra.mxu0 %v307
    %317 = vmatpush.bf16.msra.mxu0 %v306
    %318 = vmatpush.bf16.msra.mxu0 %v305
    %319 = vmatpush.bf16.msra.mxu0 %v304
    %320 = vmatpush.bf16.msra.mxu0 %v303
    %321 = vmatpush.bf16.msra.mxu0 %v302
    %322 = vmatpush.bf16.msra.mxu0 %v301
    %323 = vmatpush.bf16.msra.mxu0 %v300
    %324 = vmatmul.bf16.gmra.mxu0 %v247
    %v325 = vpop.f32.mrf.mxu0
    %v326 = vadd.f32 %v266, %v325
    %v327 = vpop.f32.mrf.mxu0
    %328 = vdwg.mxu0
    %v329 = vmax.f32 %v326, 0.0
    %v330 = vpack.c.bf16 %v329, %v329
    %v331 = vld [vmem:[#allocation11] sm:$0xf]
    %v332 = vld [vmem:[#allocation11 + $0x4] sm:$0xf]
    %v333 = vld [vmem:[#allocation11 + $0x8] sm:$0xf]
    %v334 = vld [vmem:[#allocation11 + $0xc] sm:$0xf]
    %v335 = vld [vmem:[#allocation11 + $0x10] sm:$0xf]
    %v336 = vld [vmem:[#allocation11 + $0x14] sm:$0xf]
    %v337 = vld [vmem:[#allocation11 + $0x18] sm:$0xf]
    %v338 = vld [vmem:[#allocation11 + $0x1c] sm:$0xf]
    %v339 = vld [vmem:[#allocation11 + $0x20] sm:$0xf]
    %v340 = vld [vmem:[#allocation11 + $0x24] sm:$0xf]
    %v341 = vld [vmem:[#allocation11 + $0x28] sm:$0xf]
    %v342 = vld [vmem:[#allocation11 + $0x2c] sm:$0xf]
    %v343 = vld [vmem:[#allocation11 + $0x30] sm:$0xf]
    %v344 = vld [vmem:[#allocation11 + $0x34] sm:$0xf]
    %v345 = vld [vmem:[#allocation11 + $0x38] sm:$0xf]
    %v346 = vld [vmem:[#allocation11 + $0x3c] sm:$0xf]
    %v347 = vld [vmem:[%s8] sm:$0x1]
    %v349 = vperm.slane %v347, 0
    %v367 = vunpack.c.l.b16 %v331
    %v368 = vunpack.c.l.b16 %v332
    %v369 = vunpack.c.l.b16 %v333
    %v370 = vunpack.c.l.b16 %v334
    %v371 = vunpack.c.l.b16 %v335
    %v372 = vunpack.c.l.b16 %v336
    %v373 = vunpack.c.l.b16 %v337
    %v374 = vunpack.c.l.b16 %v338
    %v375 = vunpack.c.l.b16 %v339
    %v376 = vunpack.c.l.b16 %v340
    %v377 = vunpack.c.l.b16 %v341
    %v378 = vunpack.c.l.b16 %v342
    %v379 = vunpack.c.l.b16 %v343
    %v380 = vunpack.c.l.b16 %v344
    %v381 = vunpack.c.l.b16 %v345
    %v382 = vunpack.c.l.b16 %v346
    %v383 = vpack.c.b16 %v368, %v367
    %v384 = vpack.c.b16 %v370, %v369
    %v385 = vpack.c.b16 %v372, %v371
    %v386 = vpack.c.b16 %v374, %v373
    %v387 = vpack.c.b16 %v376, %v375
    %v388 = vpack.c.b16 %v378, %v377
    %v389 = vpack.c.b16 %v380, %v379
    %v390 = vpack.c.b16 %v382, %v381
    %399 = vmatpush.bf16.msra.mxu0 %v390
    %400 = vmatpush.bf16.msra.mxu0 %v389
    %401 = vmatpush.bf16.msra.mxu0 %v388
    %402 = vmatpush.bf16.msra.mxu0 %v387
    %403 = vmatpush.bf16.msra.mxu0 %v386
    %404 = vmatpush.bf16.msra.mxu0 %v385
    %405 = vmatpush.bf16.msra.mxu0 %v384
    %406 = vmatpush.bf16.msra.mxu0 %v383
    %407 = vmatmul.bf16.gmra.mxu0 %v330
    %v408 = vpop.f32.mrf.mxu0
    %v409 = vadd.f32 %v349, %v408
    %v410 = vpop.f32.mrf.mxu0
    %411 = vdwg.mxu0
    %v412 = vsub.f32 0.0, %v409
    %v413 = vmul.f32 %v412, 1.442695
    %v414 = vpow.pop %v413
    %v415 = vadd.f32 %v414, 1.0
    %v416 = vrcp.pop %v415
    %v417 = vpack.c.bf16 %v416, %v416
    %418 = vst [vmem:[#allocation13] sm:$0xf] %v417
    // Predicated region
    $region62: #{numerical_decoder.1} parent=1 // pred_check
      _
    $region63: #{numerical_decoder.1} parent=1 // pred_check_branch
      %420 = sbr.rel (0) target = $region65
    $region64: #{numerical_decoder.1} parent=1 // pred_region
      %422 = vsyncadd [#allocation4], 0
      %s424 = sshll.u32 [#allocation13], 4
      %s425 = int_to_ptr.vmem [resolvable:$true] %s424
      %s426 = sshll.u32 %s9, 4
      %s427 = int_to_ptr.hbm [resolvable:$true] %s426
      %429 = dma.vmem_to_hbm [thread:$0]  %s425, 64, %s427, [#allocation4]
    $region65: #{numerical_decoder.1} parent=1 // pred_fallthru
      _
    // Predicated region
    $region66: #{numerical_decoder.1} parent=1 // pred_check
      _
    $region67: #{numerical_decoder.1} parent=1 // pred_check_branch
      %431 = sbr.rel (0) target = $region69
    $region68: #{numerical_decoder.1} parent=1 // pred_region
      %433 = dma.done [#allocation4], 64
    $region69: #{numerical_decoder.1} parent=1 // pred_fallthru
      _
    %434 = vsyncpa [#allocation3], 1
    %435 = vsyncpa [#allocation6], 1
    %436 = vsyncpa [#allocation9], 1
    %437 = vsyncpa [#allocation12], 1
    %438 = vsyncpa [#allocation4], 1

</llo_original>
